<compile_context>
chip_gen: v7x
topology: tpu7x:2x2x1
jax: 0.10.0
libtpu: 0.0.40
codegen_flags: <defaults>
</compile_context>

<pallas_src>
import functools

import jax
import jax.numpy as jnp
from jax import lax
from jax.experimental import pallas as pl
from jax.experimental.pallas import tpu as pltpu

DIM = 64                    # input feature dim (module default)
HIDDEN = (128, 64, 32, 2)   # per-layer output dims of the original module
OUT = HIDDEN[-1]            # final output dim (2)

_MIN_TB = 512               # tiles are multiples of 128 (lane-dense output)
_MAX_TB = 8192              # 8192*64*4 B = 2 MiB per x buffer (x2 pipelined)
_TARGET_STEPS = 8           # keep >=8 grid steps so v7x megacore stays busy


def controlnet_kernel(x_ref, wt_ref, bt_ref, o_ref):
    """o = W_eff^T @ x^T + b_eff^T for one batch tile.

    x_ref : (tb, 64)  input tile (batch on sublanes, features on lanes)
    wt_ref: (2, 64)   W_eff^T, resident in VMEM across all grid steps
    bt_ref: (2, 1)    b_eff^T, broadcast over the lane (batch) axis
    o_ref : (2, tb)   transposed output tile (lane-dense, unmasked stores)
    """
    # NT contraction (same dimension numbers as flash-attention's q @ k.T):
    # contract the 64-wide feature axis of both operands; x keeps its natural
    # (batch-on-sublanes) layout, so no per-tile XLU transpose of the big tile.
    y = lax.dot_general(
        wt_ref[...], x_ref[...],
        dimension_numbers=(((1,), (1,)), ((), ())),
        preferred_element_type=jnp.float32)
    o_ref[...] = (y + bt_ref[...]).astype(o_ref.dtype)


def _pick_tb(batch):
    """Largest useful batch tile: multiple of 128, clamped to [512, 8192],
    aiming for >= _TARGET_STEPS grid steps on large batches."""
    tb = 128 * pl.cdiv(batch, _TARGET_STEPS * 128)
    return int(max(_MIN_TB, min(_MAX_TB, tb)))


@functools.partial(jax.jit, static_argnames=("tb",))
def _controlnet_forward_impl(feature, wt, bt, *, tb):
    B, D = feature.shape
    assert D == DIM
    assert tb % 128 == 0, "batch tile must be a multiple of 128 (lane-dense)"

    # No pre-pad of x: Pallas clips the partial edge block on both the input
    # read and the output writeback (rows are independent, so garbage tail
    # rows never reach HBM).
    grid = (pl.cdiv(B, tb),)

    cost = pl.CostEstimate(
        flops=2 * B * DIM * OUT,
        transcendentals=0,
        bytes_accessed=B * DIM * 4 + OUT * B * 4 + OUT * DIM * 4 + OUT * 4,
    )

    out_t = pl.pallas_call(
        controlnet_kernel,
        out_shape=jax.ShapeDtypeStruct((OUT, B), feature.dtype),
        grid_spec=pltpu.PrefetchScalarGridSpec(
            num_scalar_prefetch=0,
            grid=grid,
            in_specs=[
                pl.BlockSpec((tb, DIM), lambda i: (i, 0)),    # x batch tile
                pl.BlockSpec((OUT, DIM), lambda i: (0, 0)),   # W_eff^T (resident)
                pl.BlockSpec((OUT, 1), lambda i: (0, 0)),     # b_eff^T (resident)
            ],
            out_specs=pl.BlockSpec((OUT, tb), lambda i: (0, i)),
        ),
        compiler_params=pltpu.CompilerParams(
            dimension_semantics=("parallel",)),   # batch tiles shard across TCs
        cost_estimate=cost,
    )(feature, wt, bt)
    return out_t


def controlnet_forward(feature, wt, bt, *, tb=None, transpose_output=True):
    """feature: (B, 64) f32.  wt: (2, 64) = W_eff^T.  bt: (2, 1) = b_eff^T.

    Returns (B, 2) (module contract).  Pass transpose_output=False to get the
    kernel-native lane-dense (2, B) and skip the tiny trailing XLA transpose.
    """
    if tb is None:
        tb = _pick_tb(feature.shape[0])
    out_t = _controlnet_forward_impl(feature, wt, bt, tb=tb)
    return out_t.T if transpose_output else out_t


def collapse_affine(params):
    """Fold the 4 affine layers into one (f32): returns (W_eff^T, b_eff^T)."""
    w1, b1 = params["w1"], params["b1"]
    w2, b2 = params["w2"], params["b2"]
    w3, b3 = params["w3"], params["b3"]
    w4, b4 = params["w4"], params["b4"]
    w_eff = w1 @ w2 @ w3 @ w4                            # (64, 2)
    b_eff = ((b1 @ w2 + b2) @ w3 + b3) @ w4 + b4         # (1, 2)
    return jnp.asarray(w_eff.T), jnp.asarray(b_eff.T)    # (2, 64), (2, 1)


def init_params(key):
    """Deterministic synthetic parameters matching nn.Linear shapes/init.

    PyTorch stores Linear.weight as (out, in); here we create the transposed
    (in, out) layout directly so every layer is y = x @ W + b.
    """
    dims = (DIM,) + HIDDEN
    params = {}
    for idx in range(4):
        fan_in, fan_out = dims[idx], dims[idx + 1]
        key, kw, kb = jax.random.split(key, 3)
        bound = 1.0 / jnp.sqrt(float(fan_in))
        params[f"w{idx+1}"] = jax.random.uniform(
            kw, (fan_in, fan_out), jnp.float32, -bound, bound)
        params[f"b{idx+1}"] = jax.random.uniform(
            kb, (1, fan_out), jnp.float32, -bound, bound)
    return params


def reference_forward(feature, params):
    """Pure-JAX layer-by-layer reference of the original module."""
    h = feature
    for idx in range(4):
        h = h @ params[f"w{idx+1}"] + params[f"b{idx+1}"]
    return h


if __name__ == "__main__":
    key = jax.random.PRNGKey(0)
    key, kx = jax.random.split(key)

    B = 1000   # deliberately NOT a multiple of the tile: exercises the
               # partial edge block (no pre-pad, no post-slice)
    feature = jax.random.normal(kx, (B, DIM), jnp.float32)
    params = init_params(key)

    wt, bt = collapse_affine(params)   # one-time setup (kept f32 for accuracy)

    out = controlnet_forward(feature, wt, bt)
    out = jax.block_until_ready(out)

    ref = reference_forward(feature, params)
    assert out.shape == (B, OUT), out.shape
    assert jnp.allclose(out, ref, atol=1e-4, rtol=1e-4), "mismatch vs reference"

    print("KERNEL_OK")
</pallas_src>

<mosaic_0001>
module attributes {stable_mosaic.version = 11 : i64} {
  func.func @controlnet_kernel(%arg0: i32, %arg1: memref<512x64xf32, #tpu.memory_space<vmem>>, %arg2: memref<2x64xf32, #tpu.memory_space<vmem>>, %arg3: memref<2x1xf32, #tpu.memory_space<vmem>>, %arg4: memref<2x512xf32, #tpu.memory_space<vmem>>) attributes {dimension_semantics = [#tpu.dimension_semantics<parallel>], iteration_bounds = array<i64: 2>, scalar_prefetch = 0 : i64, scratch_operands = 0 : i64, tpu.core_type = #tpu.core_type<tc>, window_params = [{transform_indices = @transform_0, window_bounds = array<i64: 512, 64>}, {pipeline_mode = #tpu.pipeline_mode<synchronous>, transform_indices = @transform_1, window_bounds = array<i64: 2, 64>}, {pipeline_mode = #tpu.pipeline_mode<synchronous>, transform_indices = @transform_2, window_bounds = array<i64: 2, 1>}, {transform_indices = @transform_3, window_bounds = array<i64: 2, 512>}]} {
    %c0 = arith.constant 0 : index
    %c0_0 = arith.constant 0 : index
    %0 = vector.load %arg2[%c0, %c0_0] : memref<2x64xf32, #tpu.memory_space<vmem>>, vector<2x64xf32>
    %c0_1 = arith.constant 0 : index
    %c0_2 = arith.constant 0 : index
    %1 = vector.load %arg1[%c0_1, %c0_2] : memref<512x64xf32, #tpu.memory_space<vmem>>, vector<512x64xf32>
    %cst = arith.constant dense<0.000000e+00> : vector<2x512xf32>
    %2 = tpu.matmul %0, %1, %cst {dimension_numbers = #tpu.dot_dimension_numbers<[1], [1], [0], [0], [0, 0, 1, 0], [], []>} : vector<2x64xf32>, vector<512x64xf32>, vector<2x512xf32> -> vector<2x512xf32>
    %c0_3 = arith.constant 0 : index
    %c0_4 = arith.constant 0 : index
    %3 = vector.load %arg3[%c0_3, %c0_4] : memref<2x1xf32, #tpu.memory_space<vmem>>, vector<2x1xf32>
    %4 = vector.broadcast %3 : vector<2x1xf32> to vector<2x512xf32>
    %5 = arith.addf %2, %4 : vector<2x512xf32>
    %c0_5 = arith.constant 0 : index
    %c0_6 = arith.constant 0 : index
    %6 = vector.load %arg4[%c0_5, %c0_6] : memref<2x512xf32, #tpu.memory_space<vmem>>, vector<2x512xf32>
    tpu.vector_store %arg4[%c0_5, %c0_6], %5 {strides = array<i32>} : memref<2x512xf32, #tpu.memory_space<vmem>>, vector<2x512xf32>,
    return
  }
  func.func @transform_0(%arg0: i32) -> (i32, i32) {
    %c0_i32 = arith.constant 0 : i32
    %c0_i32_0 = arith.constant 0 : i32
    return %arg0, %c0_i32 : i32, i32
  }
  func.func @transform_1(%arg0: i32) -> (i32, i32) {
    %c0_i32 = arith.constant 0 : i32
    %c0_i32_0 = arith.constant 0 : i32
    %c0_i32_1 = arith.constant 0 : i32
    return %c0_i32, %c0_i32_0 : i32, i32
  }
  func.func @transform_2(%arg0: i32) -> (i32, i32) {
    %c0_i32 = arith.constant 0 : i32
    %c0_i32_0 = arith.constant 0 : i32
    %c0_i32_1 = arith.constant 0 : i32
    return %c0_i32, %c0_i32_0 : i32, i32
  }
  func.func @transform_3(%arg0: i32) -> (i32, i32) {
    %c0_i32 = arith.constant 0 : i32
    %c0_i32_0 = arith.constant 0 : i32
    return %c0_i32, %arg0 : i32, i32
  }
}

</mosaic_0001>

<llo_original>
// kernel: _controlnet_forward_impl.1
$region0: #{_controlnet_forward_impl.1}
  #allocation0 [shape = 'u32[]', space=smem, size = 0x4, offset = 0x4, fixed_abs, tag = 'smem constant byte address 0x4 - core index']
  #allocation1 [shape = 'u32[144,128]{1,0:T(1,128)}', space=vmem, size = 0x12000, scoped, tag = 'internal scratch']
  %s0 = inlined_call_operand.vmem [shape: f32[1000,64], index: 0, kind: input, shape index: {}]
  %s1 = inlined_call_operand.vmem [shape: f32[2,64], index: 1, kind: input, shape index: {}]
  %s2 = inlined_call_operand.vmem [shape: f32[2,1], index: 2, kind: input, shape index: {}]
  %s3 = inlined_call_operand.hbm [shape: f32[2,1000], index: 3, kind: output, shape index: {}]
  %s4 = sld [smem:[#allocation0]]
  $region45: #{_controlnet_forward_impl.1} parent=0
    _
  %s6 = ssub.s32 1, %s4
  %s7 = scalar_select 0, %s6, %s4
  $region1: #{_controlnet_forward_impl.1} parent=0
    #allocation2 [shape = 'u8[8192]{0}', space=vmem, size = 0x2000, scoped, tag = 'output window, operand 0']
    #allocation3 [shape = 's32[2]{0}', space=sflag, size = 0x8, scoped, tag = 'scoped memory for _controlnet_forward_impl.1']
    %8 = vsyncpa [#allocation3], 0
    %s9 = scalar_lea.sflag [#allocation3], 1
    %10 = vsyncpa %s9, 0
    loop: start=0, step=1, limit=4
    $region2: #{_controlnet_forward_impl.1} parent=1 // loop_pre_header
      _
    $region3: #{_controlnet_forward_impl.1} parent=1 // loop_header
      %s12 = sphi 0, %s16
      %p13 = scmp.ge.s32.totalorder %s12, 4
      %s22 = sphi 0, %s24
      %s25 = sphi 0, %s22
      %s26 = sphi 0, %s25
      %s42 = sphi 0, %s26
      %s46 = sphi 0, %s46
      %s48 = sphi 0, %s46
      %s49 = sphi 0, %s48
      %s63 = sphi 0, %s49
      %s67 = sphi 0, %s67
      %s69 = sphi 0, %s67
      %s70 = sphi 0, %s69
      %s84 = sphi 0, %s70
      %s90 = sphi 0, %s92
      %s93 = sphi 0, %s90
      %s94 = sphi 0, %s93
      %s110 = sphi 0, %s94
    $region4: #{_controlnet_forward_impl.1} parent=1 // loop_header_branch
      %15 = sbr.rel (%p13) target = $region8
    $region5: #{_controlnet_forward_impl.1} parent=1 // loop_body
      %s17 = ssub.s32 %s12, 1
      %s18 = ssub.s32 %s12, 2
      %s19 = sadd.s32 %s12, 1
      %s20 = ssub.s32 %s12, %s19
      %p21 = scmp.eq.s32.totalorder %s20, 0
      %s23 = sadd.s32 %s22, 1
      %s24 = scalar_select %p21, %s22, %s23
      %p27 = pneg %p21
      %p28 = scmp.eq.s32.totalorder %s12, 1
      %p29 = por %p27, %p28
      %p30 = scmp.ne.s32.totalorder %s22, %s25
      %p31 = scmp.eq.s32.totalorder %s12, 0
      %p32 = por %p30, %p31
      %p33 = scmp.ne.s32.totalorder %s22, %s25
      %p34 = scmp.eq.s32.totalorder %s17, 1
      %p35 = por %p33, %p34
      %p36 = scmp.ne.s32.totalorder %s25, %s26
      %p37 = scmp.eq.s32.totalorder %s17, 0
      %p38 = por %p36, %p37
      %p39 = scmp.ne.s32.totalorder %s25, %s26
      %p40 = scmp.eq.s32.totalorder %s18, 1
      %p41 = por %p39, %p40
      %p43 = scmp.ne.s32.totalorder %s26, %s42
      %p44 = scmp.eq.s32.totalorder %s18, 0
      %p45 = por %p43, %p44
      %s47 = sadd.s32 %s46, 1
      %p50 = scmp.eq.s32.totalorder %s12, 1
      %p51 = scmp.ne.s32.totalorder %s46, %s48
      %p52 = scmp.eq.s32.totalorder %s12, 0
      %p53 = por %p51, %p52
      %p54 = scmp.ne.s32.totalorder %s46, %s48
      %p55 = scmp.eq.s32.totalorder %s17, 1
      %p56 = por %p54, %p55
      %p57 = scmp.ne.s32.totalorder %s48, %s49
      %p58 = scmp.eq.s32.totalorder %s17, 0
      %p59 = por %p57, %p58
      %p60 = scmp.ne.s32.totalorder %s48, %s49
      %p61 = scmp.eq.s32.totalorder %s18, 1
      %p62 = por %p60, %p61
      %p64 = scmp.ne.s32.totalorder %s49, %s63
      %p65 = scmp.eq.s32.totalorder %s18, 0
      %p66 = por %p64, %p65
      %s68 = sadd.s32 %s67, 1
      %p71 = scmp.eq.s32.totalorder %s12, 1
      %p72 = scmp.ne.s32.totalorder %s67, %s69
      %p73 = scmp.eq.s32.totalorder %s12, 0
      %p74 = por %p72, %p73
      %p75 = scmp.ne.s32.totalorder %s67, %s69
      %p76 = scmp.eq.s32.totalorder %s17, 1
      %p77 = por %p75, %p76
      %p78 = scmp.ne.s32.totalorder %s69, %s70
      %p79 = scmp.eq.s32.totalorder %s17, 0
      %p80 = por %p78, %p79
      %p81 = scmp.ne.s32.totalorder %s69, %s70
      %p82 = scmp.eq.s32.totalorder %s18, 1
      %p83 = por %p81, %p82
      %p85 = scmp.ne.s32.totalorder %s70, %s84
      %p86 = scmp.eq.s32.totalorder %s18, 0
      %p87 = por %p85, %p86
      %s88 = ssub.s32 %s12, %s19
      %p89 = scmp.eq.s32.totalorder %s88, 0
      %s91 = sadd.s32 %s90, 1
      %s92 = scalar_select %p89, %s90, %s91
      %p95 = pneg %p89
      %p96 = scmp.eq.s32.totalorder %s12, 1
      %p97 = por %p95, %p96
      %p98 = scmp.ne.s32.totalorder %s90, %s93
      %p99 = scmp.eq.s32.totalorder %s12, 0
      %p100 = por %p98, %p99
      %p101 = scmp.ne.s32.totalorder %s90, %s93
      %p102 = scmp.eq.s32.totalorder %s17, 1
      %p103 = por %p101, %p102
      %p104 = scmp.ne.s32.totalorder %s93, %s94
      %p105 = scmp.eq.s32.totalorder %s17, 0
      %p106 = por %p104, %p105
      %p107 = scmp.ne.s32.totalorder %s93, %s94
      %p108 = scmp.eq.s32.totalorder %s18, 1
      %p109 = por %p107, %p108
      %p111 = scmp.ne.s32.totalorder %s94, %s110
      %p112 = scmp.eq.s32.totalorder %s18, 0
      %p113 = por %p111, %p112
      %p114 = scmp.le.s32.totalorder 1, %s12
      %p115 = scmp.lt.s32.totalorder %s12, 3
      %p116 = pnand %p114, %p115
      %p117 = pneg %p116
      // Predicated region
      $region9: #{_controlnet_forward_impl.1} parent=5 // pred_check
        _
      $region10: #{_controlnet_forward_impl.1} parent=5 // pred_check_branch
        %119 = sbr.rel (%p116) target = $region12
      $region11: #{_controlnet_forward_impl.1} parent=5 // pred_region
        %s120 = ssub.s32 %s12, 1
        // Predicated region
        $region13: #{_controlnet_forward_impl.1} parent=11 // pred_check
          %p121 = pneg %p59
        $region14: #{_controlnet_forward_impl.1} parent=11 // pred_check_branch
          %123 = sbr.rel (%p121) target = $region16
        $region15: #{_controlnet_forward_impl.1} parent=11 // pred_region
          _
        $region16: #{_controlnet_forward_impl.1} parent=11 // pred_fallthru
          _
        // Predicated region
        $region17: #{_controlnet_forward_impl.1} parent=11 // pred_check
          %p124 = pneg %p80
        $region18: #{_controlnet_forward_impl.1} parent=11 // pred_check_branch
          %126 = sbr.rel (%p124) target = $region20
        $region19: #{_controlnet_forward_impl.1} parent=11 // pred_region
          _
        $region20: #{_controlnet_forward_impl.1} parent=11 // pred_fallthru
          _
      $region12: #{_controlnet_forward_impl.1} parent=5 // pred_fallthru
        _
      %p127 = scmp.lt.s32.totalorder %s12, 2
      // Predicated region
      $region21: #{_controlnet_forward_impl.1} parent=5 // pred_check
        %p128 = pneg %p127
      $region22: #{_controlnet_forward_impl.1} parent=5 // pred_check_branch
        %130 = sbr.rel (%p128) target = $region24
      $region23: #{_controlnet_forward_impl.1} parent=5 // pred_region
        // Predicated region
        $region25: #{_controlnet_forward_impl.1} parent=23 // pred_check
          %p131 = pneg %p32
        $region26: #{_controlnet_forward_impl.1} parent=23 // pred_check_branch
          %133 = sbr.rel (%p131) target = $region28
        $region27: #{_controlnet_forward_impl.1} parent=23 // pred_region
          %s134 = smul.u32 64, %s12
          %s135 = ssub.s32 125, %s134
          %p136 = scmp.lt.s32.totalorder %s135, 64
          %s137 = scalar_select %p136, %s135, 64
          %s138 = smul.u32 128, %s137
          %p139 = scmp.lt.s32.totalorder %s134, 124
          %s140 = scalar_select %p139, %s134, 124
          %s141 = smul.addr %s140, 8
          %s142 = scalar_lea.vmem %s0, %s141
          %s143 = smul.u32 64, %s12
          %s144 = ssub.s32 125, %s143
          %p145 = scmp.lt.s32.totalorder %s144, 64
          %s146 = scalar_select %p145, %s144, 64
          %s147 = smul.u32 128, %s146
        $region28: #{_controlnet_forward_impl.1} parent=23 // pred_fallthru
          _
      $region24: #{_controlnet_forward_impl.1} parent=5 // pred_fallthru
        _
      %p148 = scmp.le.s32.totalorder 1, %s12
      %p149 = scmp.lt.s32.totalorder %s12, 3
      %p150 = pnand %p148, %p149
      %p151 = pneg %p150
      // Predicated region
      $region29: #{_controlnet_forward_impl.1} parent=5 // pred_check
        _
      $region30: #{_controlnet_forward_impl.1} parent=5 // pred_check_branch
        %153 = sbr.rel (%p150) target = $region32
      $region31: #{_controlnet_forward_impl.1} parent=5 // pred_region
        %s154 = ssub.s32 %s12, 1
        %s155 = smul.u32 64, %s17
        %s156 = ssub.s32 125, %s155
        %p157 = scmp.lt.s32.totalorder %s156, 64
        %s158 = scalar_select %p157, %s156, 64
        %s159 = smul.u32 128, %s158
        %p160 = scmp.lt.s32.totalorder %s155, 124
        %s161 = scalar_select %p160, %s155, 124
        %s162 = smul.addr %s161, 8
        %s163 = scalar_lea.vmem %s0, %s162
        %p164 = pneg %p38
        %p165 = pneg %p35
        %p166 = pneg %p59
        %p167 = pneg %p56
        %p168 = pneg %p80
        %p169 = pneg %p77
        %p170 = pneg %p106
        %p171 = pneg %p103
        %s172 = sand.u32 %s93, 1
        %s173 = scalar_lea.sflag [#allocation3], %s172
        %s174 = sand.u32 %s93, 1
        %s175 = smul.addr %s174, 8
        %s176 = scalar_lea.vmem [#allocation2], %s175
        %s177 = smul.u32 64, %s17
        %s178 = ssub.s32 125, %s177
        %p179 = scmp.lt.s32.totalorder %s178, 64
        %s180 = scalar_select %p179, %s178, 64
        %s181 = smul.u32 128, %s180
        %p182 = scmp.lt.s32.totalorder %s177, 124
        %s183 = scalar_select %p182, %s177, 124
        %s184 = smul.addr %s183, 8
        %s185 = scalar_lea.vmem %s0, %s184
        %s186 = smul.u32 64, %s17
        %s187 = ssub.s32 125, %s186
        %p188 = scmp.lt.s32.totalorder %s187, 64
        %s189 = scalar_select %p188, %s187, 64
        %s190 = smul.u32 128, %s189
        %s191 = smul.u32 4, %s17
        %v192 = vld [vmem:[%s1] sm:$0x3]
        %v193 = vld [vmem:[%s185] sm:$0xff]
        %v194 = vld [vmem:[%s185 + $0x8] sm:$0xff]
        %v195 = vld [vmem:[%s185 + $0x10] sm:$0xff]
        %v196 = vld [vmem:[%s185 + $0x18] sm:$0xff]
        %v197 = vld [vmem:[%s185 + $0x20] sm:$0xff]
        %v198 = vld [vmem:[%s185 + $0x28] sm:$0xff]
        %v199 = vld [vmem:[%s185 + $0x30] sm:$0xff]
        %v200 = vld [vmem:[%s185 + $0x38] sm:$0xff]
        %v201 = vld [vmem:[%s185 + $0x40] sm:$0xff]
        %v202 = vld [vmem:[%s185 + $0x48] sm:$0xff]
        %v203 = vld [vmem:[%s185 + $0x50] sm:$0xff]
        %v204 = vld [vmem:[%s185 + $0x58] sm:$0xff]
        %v205 = vld [vmem:[%s185 + $0x60] sm:$0xff]
        %v206 = vld [vmem:[%s185 + $0x68] sm:$0xff]
        %v207 = vld [vmem:[%s185 + $0x70] sm:$0xff]
        %v208 = vld [vmem:[%s185 + $0x78] sm:$0xff]
        %v209 = vld [vmem:[%s185 + $0x80] sm:$0xff]
        %v210 = vld [vmem:[%s185 + $0x88] sm:$0xff]
        %v211 = vld [vmem:[%s185 + $0x90] sm:$0xff]
        %v212 = vld [vmem:[%s185 + $0x98] sm:$0xff]
        %v213 = vld [vmem:[%s185 + $0xa0] sm:$0xff]
        %v214 = vld [vmem:[%s185 + $0xa8] sm:$0xff]
        %v215 = vld [vmem:[%s185 + $0xb0] sm:$0xff]
        %v216 = vld [vmem:[%s185 + $0xb8] sm:$0xff]
        %v217 = vld [vmem:[%s185 + $0xc0] sm:$0xff]
        %v218 = vld [vmem:[%s185 + $0xc8] sm:$0xff]
        %v219 = vld [vmem:[%s185 + $0xd0] sm:$0xff]
        %v220 = vld [vmem:[%s185 + $0xd8] sm:$0xff]
        %v221 = vld [vmem:[%s185 + $0xe0] sm:$0xff]
        %v222 = vld [vmem:[%s185 + $0xe8] sm:$0xff]
        %v223 = vld [vmem:[%s185 + $0xf0] sm:$0xff]
        %v224 = vld [vmem:[%s185 + $0xf8] sm:$0xff]
        %v225 = vld [vmem:[%s185 + $0x100] sm:$0xff]
        %v226 = vld [vmem:[%s185 + $0x108] sm:$0xff]
        %v227 = vld [vmem:[%s185 + $0x110] sm:$0xff]
        %v228 = vld [vmem:[%s185 + $0x118] sm:$0xff]
        %v229 = vld [vmem:[%s185 + $0x120] sm:$0xff]
        %v230 = vld [vmem:[%s185 + $0x128] sm:$0xff]
        %v231 = vld [vmem:[%s185 + $0x130] sm:$0xff]
        %v232 = vld [vmem:[%s185 + $0x138] sm:$0xff]
        %v233 = vld [vmem:[%s185 + $0x140] sm:$0xff]
        %v234 = vld [vmem:[%s185 + $0x148] sm:$0xff]
        %v235 = vld [vmem:[%s185 + $0x150] sm:$0xff]
        %v236 = vld [vmem:[%s185 + $0x158] sm:$0xff]
        %v237 = vld [vmem:[%s185 + $0x160] sm:$0xff]
        %v238 = vld [vmem:[%s185 + $0x168] sm:$0xff]
        %v239 = vld [vmem:[%s185 + $0x170] sm:$0xff]
        %v240 = vld [vmem:[%s185 + $0x178] sm:$0xff]
        %v241 = vld [vmem:[%s185 + $0x180] sm:$0xff]
        %v242 = vld [vmem:[%s185 + $0x188] sm:$0xff]
        %v243 = vld [vmem:[%s185 + $0x190] sm:$0xff]
        %v244 = vld [vmem:[%s185 + $0x198] sm:$0xff]
        %v245 = vld [vmem:[%s185 + $0x1a0] sm:$0xff]
        %v246 = vld [vmem:[%s185 + $0x1a8] sm:$0xff]
        %v247 = vld [vmem:[%s185 + $0x1b0] sm:$0xff]
        %v248 = vld [vmem:[%s185 + $0x1b8] sm:$0xff]
        %v249 = vld [vmem:[%s185 + $0x1c0] sm:$0xff]
        %v250 = vld [vmem:[%s185 + $0x1c8] sm:$0xff]
        %v251 = vld [vmem:[%s185 + $0x1d0] sm:$0xff]
        %v252 = vld [vmem:[%s185 + $0x1d8] sm:$0xff]
        %v253 = vld [vmem:[%s185 + $0x1e0] sm:$0xff]
        %v254 = vld [vmem:[%s185 + $0x1e8] sm:$0xff]
        %v255 = vld [vmem:[%s185 + $0x1f0] sm:$0xff]
        %v256 = vld [vmem:[%s185 + $0x1f8] sm:$0xff]
        %v257 = vld [vmem:[%s2] sm:$0x3]
        %259 = vset.pattern.permute.xlu0 0
        %260 = vperm.xlu0 %259, %v257
        %v261 = vpop.permute.xlu0 %260
        %vm263 = vcmask 523264
        %v265 = vsel %vm263, %v192, 0
        %v268 = vsel %vm263, %v193, 0
        %v271 = vsel %vm263, %v194, 0
        %v274 = vsel %vm263, %v195, 0
        %v277 = vsel %vm263, %v196, 0
        %v280 = vsel %vm263, %v197, 0
        %v283 = vsel %vm263, %v198, 0
        %v286 = vsel %vm263, %v199, 0
        %v289 = vsel %vm263, %v200, 0
        %v292 = vsel %vm263, %v201, 0
        %v295 = vsel %vm263, %v202, 0
        %v298 = vsel %vm263, %v203, 0
        %v301 = vsel %vm263, %v204, 0
        %v304 = vsel %vm263, %v205, 0
        %v307 = vsel %vm263, %v206, 0
        %v310 = vsel %vm263, %v207, 0
        %v313 = vsel %vm263, %v208, 0
        %v316 = vsel %vm263, %v209, 0
        %v319 = vsel %vm263, %v210, 0
        %v322 = vsel %vm263, %v211, 0
        %v325 = vsel %vm263, %v212, 0
        %v328 = vsel %vm263, %v213, 0
        %v331 = vsel %vm263, %v214, 0
        %v334 = vsel %vm263, %v215, 0
        %v337 = vsel %vm263, %v216, 0
        %v340 = vsel %vm263, %v217, 0
        %v343 = vsel %vm263, %v218, 0
        %v346 = vsel %vm263, %v219, 0
        %v349 = vsel %vm263, %v220, 0
        %v352 = vsel %vm263, %v221, 0
        %v355 = vsel %vm263, %v222, 0
        %v358 = vsel %vm263, %v223, 0
        %v361 = vsel %vm263, %v224, 0
        %v364 = vsel %vm263, %v225, 0
        %v367 = vsel %vm263, %v226, 0
        %v370 = vsel %vm263, %v227, 0
        %v373 = vsel %vm263, %v228, 0
        %v376 = vsel %vm263, %v229, 0
        %v379 = vsel %vm263, %v230, 0
        %v382 = vsel %vm263, %v231, 0
        %v385 = vsel %vm263, %v232, 0
        %v388 = vsel %vm263, %v233, 0
        %v391 = vsel %vm263, %v234, 0
        %v394 = vsel %vm263, %v235, 0
        %v397 = vsel %vm263, %v236, 0
        %v400 = vsel %vm263, %v237, 0
        %v403 = vsel %vm263, %v238, 0
        %v406 = vsel %vm263, %v239, 0
        %v409 = vsel %vm263, %v240, 0
        %v412 = vsel %vm263, %v241, 0
        %v415 = vsel %vm263, %v242, 0
        %v418 = vsel %vm263, %v243, 0
        %v421 = vsel %vm263, %v244, 0
        %v424 = vsel %vm263, %v245, 0
        %v427 = vsel %vm263, %v246, 0
        %v430 = vsel %vm263, %v247, 0
        %v433 = vsel %vm263, %v248, 0
        %v436 = vsel %vm263, %v249, 0
        %v439 = vsel %vm263, %v250, 0
        %v442 = vsel %vm263, %v251, 0
        %v445 = vsel %vm263, %v252, 0
        %v448 = vsel %vm263, %v253, 0
        %v451 = vsel %vm263, %v254, 0
        %v454 = vsel %vm263, %v255, 0
        %v457 = vsel %vm263, %v256, 0
        %459 = vmatprep.subr.mxu0 0.0
        %460 = vmatpush1.xpose.msra.mxu0 %v268
        %461 = vmatprep.subr.mxu0 0.0
        %462 = vmatpush1.xpose.msra.mxu0 %v271
        %463 = vmatprep.subr.mxu0 0.0
        %464 = vmatpush1.xpose.msra.mxu0 %v274
        %465 = vmatprep.subr.mxu0 0.0
        %466 = vmatpush1.xpose.msra.mxu0 %v277
        %467 = vmatprep.subr.mxu0 0.0
        %468 = vmatpush1.xpose.msra.mxu0 %v280
        %469 = vmatprep.subr.mxu0 0.0
        %470 = vmatpush1.xpose.msra.mxu0 %v283
        %471 = vmatprep.subr.mxu0 0.0
        %472 = vmatpush1.xpose.msra.mxu0 %v286
        %473 = vmatprep.subr.mxu0 0.0
        %474 = vmatpush1.xpose.msra.mxu0 %v289
        %475 = vmatprep.subr.mxu0 0.0
        %476 = vmatpush1.xpose.msra.mxu0 %v292
        %477 = vmatprep.subr.mxu0 0.0
        %478 = vmatpush1.xpose.msra.mxu0 %v295
        %479 = vmatprep.subr.mxu0 0.0
        %480 = vmatpush1.xpose.msra.mxu0 %v298
        %481 = vmatprep.subr.mxu0 0.0
        %482 = vmatpush1.xpose.msra.mxu0 %v301
        %483 = vmatprep.subr.mxu0 0.0
        %484 = vmatpush1.xpose.msra.mxu0 %v304
        %485 = vmatprep.subr.mxu0 0.0
        %486 = vmatpush1.xpose.msra.mxu0 %v307
        %487 = vmatprep.subr.mxu0 0.0
        %488 = vmatpush1.xpose.msra.mxu0 %v310
        %489 = vmatprep.subr.mxu0 0.0
        %490 = vmatpush1.xpose.msra.mxu0 %v313
        %491 = vmatprep.subr.mxu0 0.0
        %492 = vmatpush1.xpose.msra.mxu0 %v316
        %493 = vmatprep.subr.mxu0 0.0
        %494 = vmatpush1.xpose.msra.mxu0 %v319
        %495 = vmatprep.subr.mxu0 0.0
        %496 = vmatpush1.xpose.msra.mxu0 %v322
        %497 = vmatprep.subr.mxu0 0.0
        %498 = vmatpush1.xpose.msra.mxu0 %v325
        %499 = vmatprep.subr.mxu0 0.0
        %500 = vmatpush1.xpose.msra.mxu0 %v328
        %501 = vmatprep.subr.mxu0 0.0
        %502 = vmatpush1.xpose.msra.mxu0 %v331
        %503 = vmatprep.subr.mxu0 0.0
        %504 = vmatpush1.xpose.msra.mxu0 %v334
        %505 = vmatprep.subr.mxu0 0.0
        %506 = vmatpush1.xpose.msra.mxu0 %v337
        %507 = vmatprep.subr.mxu0 0.0
        %508 = vmatpush1.xpose.msra.mxu0 %v340
        %509 = vmatprep.subr.mxu0 0.0
        %510 = vmatpush1.xpose.msra.mxu0 %v343
        %511 = vmatprep.subr.mxu0 0.0
        %512 = vmatpush1.xpose.msra.mxu0 %v346
        %513 = vmatprep.subr.mxu0 0.0
        %514 = vmatpush1.xpose.msra.mxu0 %v349
        %515 = vmatprep.subr.mxu0 0.0
        %516 = vmatpush1.xpose.msra.mxu0 %v352
        %517 = vmatprep.subr.mxu0 0.0
        %518 = vmatpush1.xpose.msra.mxu0 %v355
        %519 = vmatprep.subr.mxu0 0.0
        %520 = vmatpush1.xpose.msra.mxu0 %v358
        %521 = vmatprep.subr.mxu0 0.0
        %522 = vmatpush1.xpose.msra.mxu0 %v361
        %523 = vmatprep.mubr.f32.mxu0 0.0
        %524 = vmatmul.mubr.f32.gmra.mrb[0].mxu0 %v265
        %v525 = vpop.f32.mrb[0].mxu0
        %v526 = vadd.f32 %v261, %v525
        %v527 = vpop.f32.mrb[0].mxu0
        %v528 = vadd.f32 %v261, %v527
        %529 = vdwg.mxu0
        %530 = vmatprep.subr.mxu0 0.0
        %531 = vmatpush1.xpose.msra.mxu0 %v364
        %532 = vmatprep.subr.mxu0 0.0
        %533 = vmatpush1.xpose.msra.mxu0 %v367
        %534 = vmatprep.subr.mxu0 0.0
        %535 = vmatpush1.xpose.msra.mxu0 %v370
        %536 = vmatprep.subr.mxu0 0.0
        %537 = vmatpush1.xpose.msra.mxu0 %v373
        %538 = vmatprep.subr.mxu0 0.0
        %539 = vmatpush1.xpose.msra.mxu0 %v376
        %540 = vmatprep.subr.mxu0 0.0
        %541 = vmatpush1.xpose.msra.mxu0 %v379
        %542 = vmatprep.subr.mxu0 0.0
        %543 = vmatpush1.xpose.msra.mxu0 %v382
        %544 = vmatprep.subr.mxu0 0.0
        %545 = vmatpush1.xpose.msra.mxu0 %v385
        %546 = vmatprep.subr.mxu0 0.0
        %547 = vmatpush1.xpose.msra.mxu0 %v388
        %548 = vmatprep.subr.mxu0 0.0
        %549 = vmatpush1.xpose.msra.mxu0 %v391
        %550 = vmatprep.subr.mxu0 0.0
        %551 = vmatpush1.xpose.msra.mxu0 %v394
        %552 = vmatprep.subr.mxu0 0.0
        %553 = vmatpush1.xpose.msra.mxu0 %v397
        %554 = vmatprep.subr.mxu0 0.0
        %555 = vmatpush1.xpose.msra.mxu0 %v400
        %556 = vmatprep.subr.mxu0 0.0
        %557 = vmatpush1.xpose.msra.mxu0 %v403
        %558 = vmatprep.subr.mxu0 0.0
        %559 = vmatpush1.xpose.msra.mxu0 %v406
        %560 = vmatprep.subr.mxu0 0.0
        %561 = vmatpush1.xpose.msra.mxu0 %v409
        %562 = vmatprep.subr.mxu0 0.0
        %563 = vmatpush1.xpose.msra.mxu0 %v412
        %564 = vmatprep.subr.mxu0 0.0
        %565 = vmatpush1.xpose.msra.mxu0 %v415
        %566 = vmatprep.subr.mxu0 0.0
        %567 = vmatpush1.xpose.msra.mxu0 %v418
        %568 = vmatprep.subr.mxu0 0.0
        %569 = vmatpush1.xpose.msra.mxu0 %v421
        %570 = vmatprep.subr.mxu0 0.0
        %571 = vmatpush1.xpose.msra.mxu0 %v424
        %572 = vmatprep.subr.mxu0 0.0
        %573 = vmatpush1.xpose.msra.mxu0 %v427
        %574 = vmatprep.subr.mxu0 0.0
        %575 = vmatpush1.xpose.msra.mxu0 %v430
        %576 = vmatprep.subr.mxu0 0.0
        %577 = vmatpush1.xpose.msra.mxu0 %v433
        %578 = vmatprep.subr.mxu0 0.0
        %579 = vmatpush1.xpose.msra.mxu0 %v436
        %580 = vmatprep.subr.mxu0 0.0
        %581 = vmatpush1.xpose.msra.mxu0 %v439
        %582 = vmatprep.subr.mxu0 0.0
        %583 = vmatpush1.xpose.msra.mxu0 %v442
        %584 = vmatprep.subr.mxu0 0.0
        %585 = vmatpush1.xpose.msra.mxu0 %v445
        %586 = vmatprep.subr.mxu0 0.0
        %587 = vmatpush1.xpose.msra.mxu0 %v448
        %588 = vmatprep.subr.mxu0 0.0
        %589 = vmatpush1.xpose.msra.mxu0 %v451
        %590 = vmatprep.subr.mxu0 0.0
        %591 = vmatpush1.xpose.msra.mxu0 %v454
        %592 = vmatprep.subr.mxu0 0.0
        %593 = vmatpush1.xpose.msra.mxu0 %v457
        %594 = vmatprep.mubr.f32.mxu0 0.0
        %595 = vmatmul.mubr.f32.gmra.mrb[0].mxu0 %v265
        %v596 = vpop.f32.mrb[0].mxu0
        %v597 = vadd.f32 %v261, %v596
        %v598 = vpop.f32.mrb[0].mxu0
        %v599 = vadd.f32 %v261, %v598
        %600 = vdwg.mxu0
        %v605 = vcombine.low %v526, %v528
        %v606 = vcombine.low %v597, %v599
        %v608 = vunpack.c.l.s4 1983009808
        %v609 = vunpack.c.0.s8 %v608
        %v610 = vlaneseq
        %v611 = vshrl.u32 %v610, 7
        %v612 = vsub.s32 %v609, %v611
        %v613 = vrot.slane %v605, %v612
        %v615 = vunpack.c.l.s4 1983009808
        %v616 = vunpack.c.0.s8 %v615
        %v617 = vlaneseq
        %v618 = vshrl.u32 %v617, 7
        %v619 = vsub.s32 %v616, %v618
        %v620 = vrot.slane %v606, %v619
        %v621 = vcombine.low %v613, %v620
        %623 = vst [vmem:[%s176] sm:$0xff] %v621
        %s624 = sand.u32 %s93, 1
        %s625 = scalar_lea.sflag [#allocation3], %s624
        %s626 = sand.u32 %s93, 1
        %s627 = smul.addr %s626, 8
        %s628 = scalar_lea.vmem [#allocation2], %s627
        // Predicated region
        $region33: #{_controlnet_forward_impl.1} parent=31 // pred_check
          %p629 = pneg %p103
        $region34: #{_controlnet_forward_impl.1} parent=31 // pred_check_branch
          %631 = sbr.rel (%p629) target = $region36
        $region35: #{_controlnet_forward_impl.1} parent=31 // pred_region
          %s632 = smul.u32 4, %s17
          %s634 = ssub.s32 128, 128
          %635 = vsyncadd %s625, %s634
          %s636 = smul.addr %s632, 32
          %s637 = scalar_lea.hbm %s3, %s636
          %s639 = sshll.u32 %s628, 4
          %s640 = int_to_ptr.vmem [resolvable:$true] %s639
          %642 = dma.vmem_to_hbm [thread:$0]  %s640, 128, %s637, %s625
        $region36: #{_controlnet_forward_impl.1} parent=31 // pred_fallthru
          _
      $region32: #{_controlnet_forward_impl.1} parent=5 // pred_fallthru
        _
      %p643 = scmp.le.s32.totalorder 2, %s12
      // Predicated region
      $region37: #{_controlnet_forward_impl.1} parent=5 // pred_check
        %p644 = pneg %p643
      $region38: #{_controlnet_forward_impl.1} parent=5 // pred_check_branch
        %646 = sbr.rel (%p644) target = $region40
      $region39: #{_controlnet_forward_impl.1} parent=5 // pred_region
        %s647 = ssub.s32 %s12, 2
        // Predicated region
        $region41: #{_controlnet_forward_impl.1} parent=39 // pred_check
          %p648 = pneg %p109
        $region42: #{_controlnet_forward_impl.1} parent=39 // pred_check_branch
          %650 = sbr.rel (%p648) target = $region44
        $region43: #{_controlnet_forward_impl.1} parent=39 // pred_region
          %s651 = sand.u32 %s94, 1
          %s652 = scalar_lea.sflag [#allocation3], %s651
          %s653 = sand.u32 %s94, 1
          %s654 = smul.addr %s653, 8
          %s655 = scalar_lea.vmem [#allocation2], %s654
          %656 = dma.done %s652, 128
        $region44: #{_controlnet_forward_impl.1} parent=39 // pred_fallthru
          _
      $region40: #{_controlnet_forward_impl.1} parent=5 // pred_fallthru
        _
    $region6: #{_controlnet_forward_impl.1} parent=1 // loop_footer
      %s16 = sadd.s32 1, %s12
    $region7: #{_controlnet_forward_impl.1} parent=1 // loop_footer_branch
      %11 = sbr.rel target = $region3
    $region8: #{_controlnet_forward_impl.1} parent=1 // loop_exit
      _
    %657 = vsyncpa [#allocation3], 1
    %s658 = scalar_lea.sflag [#allocation3], 1
    %659 = vsyncpa %s658, 1

</llo_original>
